<compile_context>
chip_gen: v5e
topology: v5e:2x2
jax: 0.10.0
libtpu: 0.0.40
codegen_flags: <defaults>
</compile_context>

<pallas_src>
import functools

import jax
import jax.numpy as jnp
from jax.experimental import pallas as pl
from jax.experimental.pallas import tpu as pltpu


# ----------------------------- hardware probing ------------------------------

def _tpu_info():
    try:
        return pltpu.get_tpu_info()
    except Exception:
        return None


def _vmem_capacity_bytes(info):
    cap = getattr(info, "vmem_capacity_bytes", None) if info is not None else None
    try:
        cap = int(cap) if cap else None
    except Exception:
        cap = None
    return cap if cap else (64 << 20)          # conservative default (v7x per-TC)


def _has_native_bf16_valu(info):
    # v6e / v7x have bf16 VALUs; v5e does not.  Best-effort sniff; default True
    # (on v5e the bf16 multiply is still correct, just compiler-upcast).
    try:
        ver = str(getattr(info, "chip_version", "") or "")
        if "5" in ver:
            return False
    except Exception:
        pass
    return True


# --------------------------------- kernels -----------------------------------

def _fused_ca_kernel(x_ref, w1t_ref, b1_ref, w2_ref, b2_ref, o_ref, *,
                     inv_hw, native_mul):
    """Single-pass CALayer for one batch: pool + MLP + sigmoid + rescale.

    x_ref:   (1, C, HW)   full per-batch slab, resident in VMEM
    w1t_ref: (C, Cr)      conv1 weight transposed;  b1_ref: (1, Cr)
    w2_ref:  (C, Cr)      conv2 weight;             b2_ref: (C, 1)
    o_ref:   (1, C, HW)
    """
    x = x_ref[0]                                            # (C, HW), input dtype
    xf = x.astype(jnp.float32)
    mean = jnp.sum(xf, axis=-1, keepdims=True) * inv_hw     # (C, 1) f32

    w1t = w1t_ref[...].astype(jnp.float32)                  # (C, Cr)
    b1 = b1_ref[...].astype(jnp.float32)                    # (1, Cr)
    hdd = jnp.maximum(jnp.sum(w1t * mean, axis=0, keepdims=True) + b1, 0.0)  # (1, Cr)
    w2 = w2_ref[...].astype(jnp.float32)                    # (C, Cr)
    b2 = b2_ref[...].astype(jnp.float32)                    # (C, 1)
    z = jnp.sum(w2 * hdd, axis=-1, keepdims=True) + b2      # (C, 1)
    att = 1.0 / (1.0 + jnp.exp(-z))                         # sigmoid, (C, 1) f32

    if native_mul:
        o_ref[0] = x * att.astype(o_ref.dtype)              # stay in input dtype
    else:
        o_ref[0] = (xf * att).astype(o_ref.dtype)


def _pool_attn_kernel(x_ref, w1t_ref, b1_ref, w2_ref, b2_ref, att_ref, acc_ref,
                      *, hw, tile_hw):
    """Fallback pass 1: global average pool + 1x1-conv MLP + sigmoid."""
    j = pl.program_id(1)
    last = pl.num_programs(1) - 1

    @pl.when(j == 0)
    def _init():
        acc_ref[...] = jnp.zeros_like(acc_ref)

    if hw % tile_hw != 0:
        # Only the last spatial tile pays the mask (iota/compare/select).
        @pl.when(j != last)
        def _acc_plain():
            x = x_ref[0].astype(jnp.float32)
            acc_ref[...] += jnp.sum(x, axis=-1, keepdims=True)

        @pl.when(j == last)
        def _acc_masked():
            x = x_ref[0].astype(jnp.float32)
            col = jax.lax.broadcasted_iota(jnp.int32, x.shape, 1) + j * tile_hw
            acc_ref[...] += jnp.sum(jnp.where(col < hw, x, 0.0),
                                    axis=-1, keepdims=True)
    else:
        x = x_ref[0].astype(jnp.float32)
        acc_ref[...] += jnp.sum(x, axis=-1, keepdims=True)

    @pl.when(j == last)
    def _finalize():
        mean = acc_ref[...] * (1.0 / hw)                    # (C, 1)
        w1t = w1t_ref[...].astype(jnp.float32)              # (C, Cr)
        b1 = b1_ref[...].astype(jnp.float32)                # (1, Cr)
        hdd = jnp.maximum(jnp.sum(w1t * mean, axis=0, keepdims=True) + b1, 0.0)
        w2 = w2_ref[...].astype(jnp.float32)                # (C, Cr)
        b2 = b2_ref[...].astype(jnp.float32)                # (C, 1)
        z = jnp.sum(w2 * hdd, axis=-1, keepdims=True) + b2  # (C, 1)
        att_ref[0] = 1.0 / (1.0 + jnp.exp(-z))


def _scale_kernel(x_ref, att_ref, o_ref, *, native_mul):
    """Fallback pass 2: out = x * attention (broadcast over lane axis)."""
    a = att_ref[0]                                          # (C, 1) f32
    if native_mul:
        o_ref[0] = x_ref[0] * a.astype(o_ref.dtype)
    else:
        o_ref[0] = (x_ref[0].astype(jnp.float32) * a).astype(o_ref.dtype)


# --------------------------------- wrapper ------------------------------------

def _choose_tile_hw(hw, c, itemsize, tile_budget_bytes):
    """Largest lane-dense spatial tile (multiple of 128) under the budget."""
    max_elems = max(128, tile_budget_bytes // max(1, c * itemsize))
    if hw <= max_elems:
        return hw
    return max(128, (max_elems // 128) * 128)


def ca_layer(x, w1, b1, w2, b2, *, donate_x=False,
             force_two_pass=False, tile_hw_override=None):
    """CALayer forward.

    x:  (B, C, H, W)
    w1: (Cr, C)  b1: (Cr,)    (squeezed 1x1 conv: C -> Cr)
    w2: (C, Cr)  b2: (C,)     (squeezed 1x1 conv: Cr -> C)
    """
    b, c, h, w = x.shape
    hw = h * w
    cr = w1.shape[0]
    itemsize = x.dtype.itemsize

    info = _tpu_info()
    vmem_cap = _vmem_capacity_bytes(info)
    # 64 MiB scoped limit on 128 MiB parts (v5e/v6e), 32 MiB on v7x (64 MiB/TC).
    vmem_limit = max(16 << 20, min(vmem_cap // 2, 64 << 20))
    work_budget = int(0.8 * vmem_limit)        # headroom for weights / scratch

    native_mul = (x.dtype == jnp.float32) or (
        x.dtype == jnp.bfloat16 and _has_native_bf16_valu(info))

    # Keep NCHW; just flatten spatial so the last (lane) axis is dense.
    x3 = x.reshape(b, c, hw)
    w1t = jnp.transpose(w1).reshape(c, cr)
    b1r = b1.reshape(1, cr)
    w2m = w2.reshape(c, cr)
    b2c = b2.reshape(c, 1)

    slab_bytes = c * hw * itemsize
    weight_bytes = (2 * c * cr + cr + c) * 4
    aliases = {0: 0} if donate_x else {}

    # ---------------- fused single-pass path (1 read + 1 write of x) --------
    fused_ok = (not force_two_pass) and (
        4 * slab_bytes + weight_bytes <= work_budget)   # in+out, double-buffered

    if fused_ok:
        x_spec = pl.BlockSpec((1, c, hw), lambda i: (i, 0, 0))

        def wspec(shape):
            return pl.BlockSpec(shape, lambda i: (0, 0))

        y3 = pl.pallas_call(
            functools.partial(_fused_ca_kernel, inv_hw=1.0 / hw,
                              native_mul=native_mul),
            out_shape=jax.ShapeDtypeStruct((b, c, hw), x.dtype),
            grid=(b,),
            in_specs=[x_spec, wspec((c, cr)), wspec((1, cr)),
                      wspec((c, cr)), wspec((c, 1))],
            out_specs=x_spec,
            input_output_aliases=aliases,
            compiler_params=pltpu.CompilerParams(
                dimension_semantics=("parallel",),
                vmem_limit_bytes=vmem_limit),
        )(x3, w1t, b1r, w2m, b2c)
        return y3.reshape(b, c, h, w)

    # ---------------- two-pass fallback for large H*W -----------------------
    # TODO(synk): for B < num TensorCores (v7x megacore), additionally split
    # the hw reduction of pass 1 across a second parallel axis with per-core
    # partial sums combined in an epilogue.

    # Pass 1 double-buffers only its input tile; pass 2 needs in+out tiles
    # double-buffered -> give pass 1 a ~2x larger tile under the same limit.
    tile_hw_1 = tile_hw_override or _choose_tile_hw(hw, c, itemsize, work_budget // 2)
    tile_hw_2 = tile_hw_override or _choose_tile_hw(hw, c, itemsize, work_budget // 4)

    def x_spec(tile):
        return pl.BlockSpec((1, c, tile), lambda i, j: (i, 0, j))

    att_spec = pl.BlockSpec((1, c, 1), lambda i, j: (i, 0, 0))

    def wspec(shape):
        return pl.BlockSpec(shape, lambda i, j: (0, 0))

    att = pl.pallas_call(
        functools.partial(_pool_attn_kernel, hw=hw, tile_hw=tile_hw_1),
        out_shape=jax.ShapeDtypeStruct((b, c, 1), jnp.float32),
        grid=(b, pl.cdiv(hw, tile_hw_1)),
        in_specs=[x_spec(tile_hw_1), wspec((c, cr)), wspec((1, cr)),
                  wspec((c, cr)), wspec((c, 1))],
        out_specs=att_spec,
        scratch_shapes=[pltpu.VMEM((c, 1), jnp.float32)],
        compiler_params=pltpu.CompilerParams(
            dimension_semantics=("parallel", "arbitrary"),
            vmem_limit_bytes=vmem_limit),
    )(x3, w1t, b1r, w2m, b2c)

    y3 = pl.pallas_call(
        functools.partial(_scale_kernel, native_mul=native_mul),
        out_shape=jax.ShapeDtypeStruct((b, c, hw), x.dtype),
        grid=(b, pl.cdiv(hw, tile_hw_2)),
        in_specs=[x_spec(tile_hw_2), att_spec],
        out_specs=x_spec(tile_hw_2),
        input_output_aliases=aliases,
        compiler_params=pltpu.CompilerParams(
            dimension_semantics=("parallel", "parallel"),
            vmem_limit_bytes=vmem_limit),
    )(x3, att)

    return y3.reshape(b, c, h, w)


# --------------------------------- reference ----------------------------------

def _reference(x, w1, b1, w2, b2):
    xf = x.astype(jnp.float32)
    pooled = jnp.mean(xf, axis=(2, 3))                      # (B, C)
    hdd = jnp.maximum(pooled @ w1.T + b1, 0.0)              # (B, Cr)
    att = jax.nn.sigmoid(hdd @ w2.T + b2)                   # (B, C)
    return (xf * att[:, :, None, None]).astype(x.dtype)


if __name__ == "__main__":
    key = jax.random.PRNGKey(0)
    b, c = 2, 64                       # CALayer(channel=64, reduction=16)
    reduction = 16
    cr = c // reduction

    kx, k1, k2, k3, k4 = jax.random.split(key, 5)
    w1 = 0.1 * jax.random.normal(k1, (cr, c), dtype=jnp.float32)
    b1 = 0.1 * jax.random.normal(k2, (cr,), dtype=jnp.float32)
    w2 = 0.1 * jax.random.normal(k3, (c, cr), dtype=jnp.float32)
    b2 = 0.1 * jax.random.normal(k4, (c,), dtype=jnp.float32)

    # 1) Fused single-pass path (f32, small slab).
    x = jax.random.normal(kx, (b, c, 16, 16), dtype=jnp.float32)
    out = jax.block_until_ready(ca_layer(x, w1, b1, w2, b2))
    ref = _reference(x, w1, b1, w2, b2)
    assert out.shape == x.shape
    assert jnp.allclose(out, ref, atol=1e-5, rtol=1e-4), float(
        jnp.max(jnp.abs(out - ref)))

    # 2) Two-pass fallback with a non-dividing spatial tile (masked last tile).
    x2 = jax.random.normal(kx, (b, c, 18, 18), dtype=jnp.float32)
    out2 = jax.block_until_ready(
        ca_layer(x2, w1, b1, w2, b2, force_two_pass=True, tile_hw_override=128))
    ref2 = _reference(x2, w1, b1, w2, b2)
    assert jnp.allclose(out2, ref2, atol=1e-5, rtol=1e-4), float(
        jnp.max(jnp.abs(out2 - ref2)))

    # 3) bf16 native-multiply path (fused).
    xb = jax.random.normal(kx, (b, c, 16, 16), dtype=jnp.bfloat16)
    outb = jax.block_until_ready(ca_layer(xb, w1, b1, w2, b2))
    refb = _reference(xb, w1, b1, w2, b2).astype(jnp.float32)
    assert jnp.allclose(outb.astype(jnp.float32), refb, atol=5e-2, rtol=5e-2), float(
        jnp.max(jnp.abs(outb.astype(jnp.float32) - refb)))

    print("KERNEL_OK")
</pallas_src>

<mosaic_0001>
module attributes {stable_mosaic.version = 11 : i64} {
  func.func @_fused_ca_kernel(%arg0: i32, %arg1: memref<1x64x256xf32, #tpu.memory_space<vmem>>, %arg2: memref<64x4xf32, #tpu.memory_space<vmem>>, %arg3: memref<1x4xf32, #tpu.memory_space<vmem>>, %arg4: memref<64x4xf32, #tpu.memory_space<vmem>>, %arg5: memref<64x1xf32, #tpu.memory_space<vmem>>, %arg6: memref<1x64x256xf32, #tpu.memory_space<vmem>>) attributes {dimension_semantics = [#tpu.dimension_semantics<parallel>], iteration_bounds = array<i64: 2>, scalar_prefetch = 0 : i64, scratch_operands = 0 : i64, tpu.core_type = #tpu.core_type<tc>, window_params = [{transform_indices = @transform_0, window_bounds = array<i64: 1, 64, 256>}, {pipeline_mode = #tpu.pipeline_mode<synchronous>, transform_indices = @transform_1, window_bounds = array<i64: 64, 4>}, {pipeline_mode = #tpu.pipeline_mode<synchronous>, transform_indices = @transform_2, window_bounds = array<i64: 1, 4>}, {pipeline_mode = #tpu.pipeline_mode<synchronous>, transform_indices = @transform_3, window_bounds = array<i64: 64, 4>}, {pipeline_mode = #tpu.pipeline_mode<synchronous>, transform_indices = @transform_4, window_bounds = array<i64: 64, 1>}, {transform_indices = @transform_5, window_bounds = array<i64: 1, 64, 256>}]} {
    %c0 = arith.constant 0 : index
    %c0_0 = arith.constant 0 : index
    %c0_1 = arith.constant 0 : index
    %0 = vector.load %arg1[%c0, %c0_0, %c0_1] : memref<1x64x256xf32, #tpu.memory_space<vmem>>, vector<1x64x256xf32>
    %1 = vector.shape_cast %0 : vector<1x64x256xf32> to vector<64x256xf32>
    %cst = arith.constant dense<0.000000e+00> : vector<64xf32>
    %2 = vector.multi_reduction <add>, %1, %cst [1] : vector<64x256xf32> to vector<64xf32>
    %3 = vector.shape_cast %2 : vector<64xf32> to vector<64x1xf32>
    %cst_2 = arith.constant 3.906250e-03 : f32
    %4 = vector.broadcast %cst_2 : f32 to vector<64x1xf32>
    %5 = arith.mulf %3, %4 : vector<64x1xf32>
    %c0_3 = arith.constant 0 : index
    %c0_4 = arith.constant 0 : index
    %6 = vector.load %arg2[%c0_3, %c0_4] : memref<64x4xf32, #tpu.memory_space<vmem>>, vector<64x4xf32>
    %c0_5 = arith.constant 0 : index
    %c0_6 = arith.constant 0 : index
    %7 = vector.load %arg3[%c0_5, %c0_6] : memref<1x4xf32, #tpu.memory_space<vmem>>, vector<1x4xf32>
    %8 = vector.broadcast %5 : vector<64x1xf32> to vector<64x4xf32>
    %9 = arith.mulf %6, %8 : vector<64x4xf32>
    %cst_7 = arith.constant dense<0.000000e+00> : vector<4xf32>
    %10 = vector.multi_reduction <add>, %9, %cst_7 [0] : vector<64x4xf32> to vector<4xf32>
    %11 = vector.shape_cast %10 : vector<4xf32> to vector<1x4xf32>
    %12 = arith.addf %11, %7 : vector<1x4xf32>
    %cst_8 = arith.constant 0.000000e+00 : f32
    %13 = vector.broadcast %cst_8 : f32 to vector<1x4xf32>
    %14 = arith.maximumf %12, %13 : vector<1x4xf32>
    %c0_9 = arith.constant 0 : index
    %c0_10 = arith.constant 0 : index
    %15 = vector.load %arg4[%c0_9, %c0_10] : memref<64x4xf32, #tpu.memory_space<vmem>>, vector<64x4xf32>
    %c0_11 = arith.constant 0 : index
    %c0_12 = arith.constant 0 : index
    %16 = vector.load %arg5[%c0_11, %c0_12] : memref<64x1xf32, #tpu.memory_space<vmem>>, vector<64x1xf32>
    %17 = vector.broadcast %14 : vector<1x4xf32> to vector<64x4xf32>
    %18 = arith.mulf %15, %17 : vector<64x4xf32>
    %cst_13 = arith.constant dense<0.000000e+00> : vector<64xf32>
    %19 = vector.multi_reduction <add>, %18, %cst_13 [1] : vector<64x4xf32> to vector<64xf32>
    %20 = vector.shape_cast %19 : vector<64xf32> to vector<64x1xf32>
    %21 = arith.addf %20, %16 : vector<64x1xf32>
    %cst_14 = arith.constant 0.000000e+00 : f32
    %22 = vector.broadcast %cst_14 : f32 to vector<64x1xf32>
    %23 = arith.subf %22, %21 : vector<64x1xf32>
    %24 = math.exp %23 : vector<64x1xf32>
    %cst_15 = arith.constant 1.000000e+00 : f32
    %25 = vector.broadcast %cst_15 : f32 to vector<64x1xf32>
    %26 = arith.addf %25, %24 : vector<64x1xf32>
    %cst_16 = arith.constant 1.000000e+00 : f32
    %27 = vector.broadcast %cst_16 : f32 to vector<64x1xf32>
    %28 = arith.divf %27, %26 : vector<64x1xf32>
    %29 = vector.broadcast %28 : vector<64x1xf32> to vector<64x256xf32>
    %30 = arith.mulf %1, %29 : vector<64x256xf32>
    %c0_17 = arith.constant 0 : index
    %c0_18 = arith.constant 0 : index
    %c0_19 = arith.constant 0 : index
    %31 = vector.load %arg6[%c0_17, %c0_18, %c0_19] : memref<1x64x256xf32, #tpu.memory_space<vmem>>, vector<1x64x256xf32>
    %32 = vector.shape_cast %31 : vector<1x64x256xf32> to vector<64x256xf32>
    %33 = vector.shape_cast %30 : vector<64x256xf32> to vector<1x64x256xf32>
    tpu.vector_store %arg6[%c0_17, %c0_18, %c0_19], %33 {strides = array<i32>} : memref<1x64x256xf32, #tpu.memory_space<vmem>>, vector<1x64x256xf32>,
    return
  }
  func.func @transform_0(%arg0: i32) -> (i32, i32, i32) {
    %c0_i32 = arith.constant 0 : i32
    %c0_i32_0 = arith.constant 0 : i32
    %c0_i32_1 = arith.constant 0 : i32
    return %arg0, %c0_i32, %c0_i32_0 : i32, i32, i32
  }
  func.func @transform_1(%arg0: i32) -> (i32, i32) {
    %c0_i32 = arith.constant 0 : i32
    %c0_i32_0 = arith.constant 0 : i32
    %c0_i32_1 = arith.constant 0 : i32
    return %c0_i32, %c0_i32_0 : i32, i32
  }
  func.func @transform_2(%arg0: i32) -> (i32, i32) {
    %c0_i32 = arith.constant 0 : i32
    %c0_i32_0 = arith.constant 0 : i32
    %c0_i32_1 = arith.constant 0 : i32
    return %c0_i32, %c0_i32_0 : i32, i32
  }
  func.func @transform_3(%arg0: i32) -> (i32, i32) {
    %c0_i32 = arith.constant 0 : i32
    %c0_i32_0 = arith.constant 0 : i32
    %c0_i32_1 = arith.constant 0 : i32
    return %c0_i32, %c0_i32_0 : i32, i32
  }
  func.func @transform_4(%arg0: i32) -> (i32, i32) {
    %c0_i32 = arith.constant 0 : i32
    %c0_i32_0 = arith.constant 0 : i32
    %c0_i32_1 = arith.constant 0 : i32
    return %c0_i32, %c0_i32_0 : i32, i32
  }
  func.func @transform_5(%arg0: i32) -> (i32, i32, i32) {
    %c0_i32 = arith.constant 0 : i32
    %c0_i32_0 = arith.constant 0 : i32
    %c0_i32_1 = arith.constant 0 : i32
    return %arg0, %c0_i32, %c0_i32_0 : i32, i32, i32
  }
}

</mosaic_0001>

<llo_original>
// kernel: tpu_custom_call.1
$region0: #{tpu_custom_call.1}
  #allocation0 [shape = 'u32[]', space=smem, size = 0x4, offset = 0x4, fixed_abs, tag = 'smem constant byte address 0x4 - core index']
  #allocation1 [shape = 'u32[72,128]{1,0:T(1,128)}', space=vmem, size = 0x9000, scoped, tag = 'internal scratch']
  %s0 = inlined_call_operand.hbm [shape: f32[2,64,256], index: 0, kind: input, shape index: {}]
  %s1 = inlined_call_operand.vmem [shape: f32[64,4], index: 1, kind: input, shape index: {}]
  %s2 = inlined_call_operand.vmem [shape: f32[1,4], index: 2, kind: input, shape index: {}]
  %s3 = inlined_call_operand.vmem [shape: f32[64,4], index: 3, kind: input, shape index: {}]
  %s4 = inlined_call_operand.vmem [shape: f32[64,1], index: 4, kind: input, shape index: {}]
  %s5 = inlined_call_operand.hbm [shape: f32[2,64,256], index: 5, kind: output, shape index: {}]
  %s6 = sld [smem:[#allocation0]]
  $region57: #{tpu_custom_call.1} parent=0
    _
  %s8 = ssub.s32 1, %s6
  %s9 = scalar_select 0, %s8, %s6
  $region1: #{tpu_custom_call.1} parent=0
    #allocation2 [shape = 'u8[131072]{0}', space=vmem, size = 0x20000, scoped, tag = 'input window, operand 0']
    #allocation3 [shape = 's32[2]{0}', space=sflag, size = 0x8, scoped, tag = 'scoped memory for tpu_custom_call.1']
    #allocation4 [shape = 's32[2]{0}', space=sflag, size = 0x8, scoped, tag = 'scoped memory for tpu_custom_call.1']
    #allocation5 [shape = 'u8[131072]{0}', space=vmem, size = 0x20000, scoped, tag = 'output window, operand 0']
    %10 = vsyncpa [#allocation3], 0
    %s11 = scalar_lea.sflag [#allocation3], 1
    %12 = vsyncpa %s11, 0
    %13 = vsyncpa [#allocation4], 0
    %s14 = scalar_lea.sflag [#allocation4], 1
    %15 = vsyncpa %s14, 0
    loop: start=0, step=1, limit=4
    $region2: #{tpu_custom_call.1} parent=1 // loop_pre_header
      _
    $region3: #{tpu_custom_call.1} parent=1 // loop_header
      %s17 = sphi 0, %s21
      %p18 = scmp.ge.s32.totalorder %s17, 4
      %s27 = sphi 0, %s29
      %s30 = sphi 0, %s27
      %s31 = sphi 0, %s30
      %s47 = sphi 0, %s31
      %s51 = sphi 0, %s51
      %s53 = sphi 0, %s51
      %s54 = sphi 0, %s53
      %s68 = sphi 0, %s54
      %s72 = sphi 0, %s72
      %s74 = sphi 0, %s72
      %s75 = sphi 0, %s74
      %s89 = sphi 0, %s75
      %s93 = sphi 0, %s93
      %s95 = sphi 0, %s93
      %s96 = sphi 0, %s95
      %s110 = sphi 0, %s96
      %s114 = sphi 0, %s114
      %s116 = sphi 0, %s114
      %s117 = sphi 0, %s116
      %s131 = sphi 0, %s117
      %s137 = sphi 0, %s139
      %s140 = sphi 0, %s137
      %s141 = sphi 0, %s140
      %s157 = sphi 0, %s141
    $region4: #{tpu_custom_call.1} parent=1 // loop_header_branch
      %20 = sbr.rel (%p18) target = $region8
    $region5: #{tpu_custom_call.1} parent=1 // loop_body
      %s22 = ssub.s32 %s17, 1
      %s23 = ssub.s32 %s17, 2
      %s24 = sadd.s32 %s17, 1
      %s25 = ssub.s32 %s17, %s24
      %p26 = scmp.eq.s32.totalorder %s25, 0
      %s28 = sadd.s32 %s27, 1
      %s29 = scalar_select %p26, %s27, %s28
      %p32 = pneg %p26
      %p33 = scmp.eq.s32.totalorder %s17, 1
      %p34 = por %p32, %p33
      %p35 = scmp.ne.s32.totalorder %s27, %s30
      %p36 = scmp.eq.s32.totalorder %s17, 0
      %p37 = por %p35, %p36
      %p38 = scmp.ne.s32.totalorder %s27, %s30
      %p39 = scmp.eq.s32.totalorder %s22, 1
      %p40 = por %p38, %p39
      %p41 = scmp.ne.s32.totalorder %s30, %s31
      %p42 = scmp.eq.s32.totalorder %s22, 0
      %p43 = por %p41, %p42
      %p44 = scmp.ne.s32.totalorder %s30, %s31
      %p45 = scmp.eq.s32.totalorder %s23, 1
      %p46 = por %p44, %p45
      %p48 = scmp.ne.s32.totalorder %s31, %s47
      %p49 = scmp.eq.s32.totalorder %s23, 0
      %p50 = por %p48, %p49
      %s52 = sadd.s32 %s51, 1
      %p55 = scmp.eq.s32.totalorder %s17, 1
      %p56 = scmp.ne.s32.totalorder %s51, %s53
      %p57 = scmp.eq.s32.totalorder %s17, 0
      %p58 = por %p56, %p57
      %p59 = scmp.ne.s32.totalorder %s51, %s53
      %p60 = scmp.eq.s32.totalorder %s22, 1
      %p61 = por %p59, %p60
      %p62 = scmp.ne.s32.totalorder %s53, %s54
      %p63 = scmp.eq.s32.totalorder %s22, 0
      %p64 = por %p62, %p63
      %p65 = scmp.ne.s32.totalorder %s53, %s54
      %p66 = scmp.eq.s32.totalorder %s23, 1
      %p67 = por %p65, %p66
      %p69 = scmp.ne.s32.totalorder %s54, %s68
      %p70 = scmp.eq.s32.totalorder %s23, 0
      %p71 = por %p69, %p70
      %s73 = sadd.s32 %s72, 1
      %p76 = scmp.eq.s32.totalorder %s17, 1
      %p77 = scmp.ne.s32.totalorder %s72, %s74
      %p78 = scmp.eq.s32.totalorder %s17, 0
      %p79 = por %p77, %p78
      %p80 = scmp.ne.s32.totalorder %s72, %s74
      %p81 = scmp.eq.s32.totalorder %s22, 1
      %p82 = por %p80, %p81
      %p83 = scmp.ne.s32.totalorder %s74, %s75
      %p84 = scmp.eq.s32.totalorder %s22, 0
      %p85 = por %p83, %p84
      %p86 = scmp.ne.s32.totalorder %s74, %s75
      %p87 = scmp.eq.s32.totalorder %s23, 1
      %p88 = por %p86, %p87
      %p90 = scmp.ne.s32.totalorder %s75, %s89
      %p91 = scmp.eq.s32.totalorder %s23, 0
      %p92 = por %p90, %p91
      %s94 = sadd.s32 %s93, 1
      %p97 = scmp.eq.s32.totalorder %s17, 1
      %p98 = scmp.ne.s32.totalorder %s93, %s95
      %p99 = scmp.eq.s32.totalorder %s17, 0
      %p100 = por %p98, %p99
      %p101 = scmp.ne.s32.totalorder %s93, %s95
      %p102 = scmp.eq.s32.totalorder %s22, 1
      %p103 = por %p101, %p102
      %p104 = scmp.ne.s32.totalorder %s95, %s96
      %p105 = scmp.eq.s32.totalorder %s22, 0
      %p106 = por %p104, %p105
      %p107 = scmp.ne.s32.totalorder %s95, %s96
      %p108 = scmp.eq.s32.totalorder %s23, 1
      %p109 = por %p107, %p108
      %p111 = scmp.ne.s32.totalorder %s96, %s110
      %p112 = scmp.eq.s32.totalorder %s23, 0
      %p113 = por %p111, %p112
      %s115 = sadd.s32 %s114, 1
      %p118 = scmp.eq.s32.totalorder %s17, 1
      %p119 = scmp.ne.s32.totalorder %s114, %s116
      %p120 = scmp.eq.s32.totalorder %s17, 0
      %p121 = por %p119, %p120
      %p122 = scmp.ne.s32.totalorder %s114, %s116
      %p123 = scmp.eq.s32.totalorder %s22, 1
      %p124 = por %p122, %p123
      %p125 = scmp.ne.s32.totalorder %s116, %s117
      %p126 = scmp.eq.s32.totalorder %s22, 0
      %p127 = por %p125, %p126
      %p128 = scmp.ne.s32.totalorder %s116, %s117
      %p129 = scmp.eq.s32.totalorder %s23, 1
      %p130 = por %p128, %p129
      %p132 = scmp.ne.s32.totalorder %s117, %s131
      %p133 = scmp.eq.s32.totalorder %s23, 0
      %p134 = por %p132, %p133
      %s135 = ssub.s32 %s17, %s24
      %p136 = scmp.eq.s32.totalorder %s135, 0
      %s138 = sadd.s32 %s137, 1
      %s139 = scalar_select %p136, %s137, %s138
      %p142 = pneg %p136
      %p143 = scmp.eq.s32.totalorder %s17, 1
      %p144 = por %p142, %p143
      %p145 = scmp.ne.s32.totalorder %s137, %s140
      %p146 = scmp.eq.s32.totalorder %s17, 0
      %p147 = por %p145, %p146
      %p148 = scmp.ne.s32.totalorder %s137, %s140
      %p149 = scmp.eq.s32.totalorder %s22, 1
      %p150 = por %p148, %p149
      %p151 = scmp.ne.s32.totalorder %s140, %s141
      %p152 = scmp.eq.s32.totalorder %s22, 0
      %p153 = por %p151, %p152
      %p154 = scmp.ne.s32.totalorder %s140, %s141
      %p155 = scmp.eq.s32.totalorder %s23, 1
      %p156 = por %p154, %p155
      %p158 = scmp.ne.s32.totalorder %s141, %s157
      %p159 = scmp.eq.s32.totalorder %s23, 0
      %p160 = por %p158, %p159
      %p161 = scmp.le.s32.totalorder 1, %s17
      %p162 = scmp.lt.s32.totalorder %s17, 3
      %p163 = pnand %p161, %p162
      %p164 = pneg %p163
      // Predicated region
      $region9: #{tpu_custom_call.1} parent=5 // pred_check
        _
      $region10: #{tpu_custom_call.1} parent=5 // pred_check_branch
        %166 = sbr.rel (%p163) target = $region12
      $region11: #{tpu_custom_call.1} parent=5 // pred_region
        %s167 = ssub.s32 %s17, 1
        // Predicated region
        $region13: #{tpu_custom_call.1} parent=11 // pred_check
          %p168 = pneg %p64
        $region14: #{tpu_custom_call.1} parent=11 // pred_check_branch
          %170 = sbr.rel (%p168) target = $region16
        $region15: #{tpu_custom_call.1} parent=11 // pred_region
          _
        $region16: #{tpu_custom_call.1} parent=11 // pred_fallthru
          _
        // Predicated region
        $region17: #{tpu_custom_call.1} parent=11 // pred_check
          %p171 = pneg %p85
        $region18: #{tpu_custom_call.1} parent=11 // pred_check_branch
          %173 = sbr.rel (%p171) target = $region20
        $region19: #{tpu_custom_call.1} parent=11 // pred_region
          _
        $region20: #{tpu_custom_call.1} parent=11 // pred_fallthru
          _
        // Predicated region
        $region21: #{tpu_custom_call.1} parent=11 // pred_check
          %p174 = pneg %p106
        $region22: #{tpu_custom_call.1} parent=11 // pred_check_branch
          %176 = sbr.rel (%p174) target = $region24
        $region23: #{tpu_custom_call.1} parent=11 // pred_region
          _
        $region24: #{tpu_custom_call.1} parent=11 // pred_fallthru
          _
        // Predicated region
        $region25: #{tpu_custom_call.1} parent=11 // pred_check
          %p177 = pneg %p127
        $region26: #{tpu_custom_call.1} parent=11 // pred_check_branch
          %179 = sbr.rel (%p177) target = $region28
        $region27: #{tpu_custom_call.1} parent=11 // pred_region
          _
        $region28: #{tpu_custom_call.1} parent=11 // pred_fallthru
          _
      $region12: #{tpu_custom_call.1} parent=5 // pred_fallthru
        _
      %p180 = scmp.lt.s32.totalorder %s17, 2
      // Predicated region
      $region29: #{tpu_custom_call.1} parent=5 // pred_check
        %p181 = pneg %p180
      $region30: #{tpu_custom_call.1} parent=5 // pred_check_branch
        %183 = sbr.rel (%p181) target = $region32
      $region31: #{tpu_custom_call.1} parent=5 // pred_region
        // Predicated region
        $region33: #{tpu_custom_call.1} parent=31 // pred_check
          %p184 = pneg %p37
        $region34: #{tpu_custom_call.1} parent=31 // pred_check_branch
          %186 = sbr.rel (%p184) target = $region36
        $region35: #{tpu_custom_call.1} parent=31 // pred_region
          %s187 = sand.u32 %s27, 1
          %s188 = scalar_lea.sflag [#allocation3], %s187
          %s189 = sand.u32 %s27, 1
          %s190 = smul.addr %s189, 128
          %s191 = scalar_lea.vmem [#allocation2], %s190
          %193 = vsyncadd %s188, 0
          %s194 = smul.addr %s17, 16
          %s195 = smul.addr %s194, 8
          %s196 = scalar_lea.hbm %s0, %s195
          %s197 = sshll.u32 %s196, 4
          %s198 = int_to_ptr.hbm [resolvable:$true] %s197
          %s199 = sshll.u32 %s191, 4
          %s200 = int_to_ptr.vmem [resolvable:$true] %s199
          %205 = dma.hbm_to_vmem [thread:$0]  %s198, 2048, %s200, %s188, 256, 256, 16
        $region36: #{tpu_custom_call.1} parent=31 // pred_fallthru
          _
      $region32: #{tpu_custom_call.1} parent=5 // pred_fallthru
        _
      %p206 = scmp.le.s32.totalorder 1, %s17
      %p207 = scmp.lt.s32.totalorder %s17, 3
      %p208 = pnand %p206, %p207
      %p209 = pneg %p208
      // Predicated region
      $region37: #{tpu_custom_call.1} parent=5 // pred_check
        _
      $region38: #{tpu_custom_call.1} parent=5 // pred_check_branch
        %211 = sbr.rel (%p208) target = $region40
      $region39: #{tpu_custom_call.1} parent=5 // pred_region
        %s212 = ssub.s32 %s17, 1
        %s213 = sand.u32 %s30, 1
        %s214 = scalar_lea.sflag [#allocation3], %s213
        %s215 = sand.u32 %s30, 1
        %s216 = smul.addr %s215, 128
        %s217 = scalar_lea.vmem [#allocation2], %s216
        // Predicated region
        $region41: #{tpu_custom_call.1} parent=39 // pred_check
          %p218 = pneg %p43
        $region42: #{tpu_custom_call.1} parent=39 // pred_check_branch
          %220 = sbr.rel (%p218) target = $region44
        $region43: #{tpu_custom_call.1} parent=39 // pred_region
          %222 = dma.done %s214, 2048
        $region44: #{tpu_custom_call.1} parent=39 // pred_fallthru
          _
        %s223 = sand.u32 %s30, 1
        %s224 = scalar_lea.sflag [#allocation3], %s223
        %s225 = sand.u32 %s30, 1
        %s226 = smul.addr %s225, 128
        %s227 = scalar_lea.vmem [#allocation2], %s226
        %p228 = pneg %p43
        %p229 = pneg %p40
        %p230 = pneg %p64
        %p231 = pneg %p61
        %p232 = pneg %p85
        %p233 = pneg %p82
        %p234 = pneg %p106
        %p235 = pneg %p103
        %p236 = pneg %p127
        %p237 = pneg %p124
        %p238 = pneg %p153
        %p239 = pneg %p150
        %s240 = sand.u32 %s140, 1
        %s241 = scalar_lea.sflag [#allocation4], %s240
        %s242 = sand.u32 %s140, 1
        %s243 = smul.addr %s242, 128
        %s244 = scalar_lea.vmem [#allocation5], %s243
        %v245 = vld [vmem:[%s217] sm:$0xff]
        %v246 = vld [vmem:[%s217 + $0x8] sm:$0xff]
        %v247 = vld [vmem:[%s217 + $0x10] sm:$0xff]
        %v248 = vld [vmem:[%s217 + $0x18] sm:$0xff]
        %v249 = vld [vmem:[%s217 + $0x20] sm:$0xff]
        %v250 = vld [vmem:[%s217 + $0x28] sm:$0xff]
        %v251 = vld [vmem:[%s217 + $0x30] sm:$0xff]
        %v252 = vld [vmem:[%s217 + $0x38] sm:$0xff]
        %v253 = vld [vmem:[%s217 + $0x40] sm:$0xff]
        %v254 = vld [vmem:[%s217 + $0x48] sm:$0xff]
        %v255 = vld [vmem:[%s217 + $0x50] sm:$0xff]
        %v256 = vld [vmem:[%s217 + $0x58] sm:$0xff]
        %v257 = vld [vmem:[%s217 + $0x60] sm:$0xff]
        %v258 = vld [vmem:[%s217 + $0x68] sm:$0xff]
        %v259 = vld [vmem:[%s217 + $0x70] sm:$0xff]
        %v260 = vld [vmem:[%s217 + $0x78] sm:$0xff]
        %v261 = vadd.f32 %v245, %v246
        %262 = vadd.xlane.f32.xlu0 %v261
        %v263 = vpop.xlane.xlu0 %262
        %v264 = vadd.f32 %v247, %v248
        %265 = vadd.xlane.f32.xlu0 %v264
        %v266 = vpop.xlane.xlu0 %265
        %v267 = vadd.f32 %v249, %v250
        %268 = vadd.xlane.f32.xlu0 %v267
        %v269 = vpop.xlane.xlu0 %268
        %v270 = vadd.f32 %v251, %v252
        %271 = vadd.xlane.f32.xlu0 %v270
        %v272 = vpop.xlane.xlu0 %271
        %v273 = vadd.f32 %v253, %v254
        %274 = vadd.xlane.f32.xlu0 %v273
        %v275 = vpop.xlane.xlu0 %274
        %v276 = vadd.f32 %v255, %v256
        %277 = vadd.xlane.f32.xlu0 %v276
        %v278 = vpop.xlane.xlu0 %277
        %v279 = vadd.f32 %v257, %v258
        %280 = vadd.xlane.f32.xlu0 %v279
        %v281 = vpop.xlane.xlu0 %280
        %v282 = vadd.f32 %v259, %v260
        %283 = vadd.xlane.f32.xlu0 %v282
        %v284 = vpop.xlane.xlu0 %283
        %v285 = vmul.f32 %v263, 0.00390625
        %v286 = vmul.f32 %v266, 0.00390625
        %v287 = vmul.f32 %v269, 0.00390625
        %v288 = vmul.f32 %v272, 0.00390625
        %v289 = vmul.f32 %v275, 0.00390625
        %v290 = vmul.f32 %v278, 0.00390625
        %v291 = vmul.f32 %v281, 0.00390625
        %v292 = vmul.f32 %v284, 0.00390625
        %v293 = vld [vmem:[%s1] sm:$0xff]
        %v294 = vld [vmem:[%s1 + $0x8] sm:$0xff]
        %v295 = vld [vmem:[%s1 + $0x10] sm:$0xff]
        %v296 = vld [vmem:[%s1 + $0x18] sm:$0xff]
        %v297 = vld [vmem:[%s1 + $0x20] sm:$0xff]
        %v298 = vld [vmem:[%s1 + $0x28] sm:$0xff]
        %v299 = vld [vmem:[%s1 + $0x30] sm:$0xff]
        %v300 = vld [vmem:[%s1 + $0x38] sm:$0xff]
        %v301 = vld [vmem:[%s2] sm:$0x1]
        %v302 = vmul.f32 %v293, %v285
        %v303 = vmul.f32 %v294, %v286
        %v304 = vmul.f32 %v295, %v287
        %v305 = vmul.f32 %v296, %v288
        %v306 = vmul.f32 %v297, %v289
        %v307 = vmul.f32 %v298, %v290
        %v308 = vmul.f32 %v299, %v291
        %v309 = vmul.f32 %v300, %v292
        %vm310 = vcmask 31744
        %v311 = vsel %vm310, %v302, 0.0
        %v312 = vsel %vm310, %v303, 0.0
        %v313 = vadd.f32 %v311, %v312
        %v314 = vsel %vm310, %v304, 0.0
        %v315 = vadd.f32 %v313, %v314
        %v316 = vsel %vm310, %v305, 0.0
        %v317 = vadd.f32 %v315, %v316
        %v318 = vsel %vm310, %v306, 0.0
        %v319 = vadd.f32 %v317, %v318
        %v320 = vsel %vm310, %v307, 0.0
        %v321 = vadd.f32 %v319, %v320
        %v322 = vsel %vm310, %v308, 0.0
        %v323 = vadd.f32 %v321, %v322
        %v324 = vsel %vm310, %v309, 0.0
        %v325 = vadd.f32 %v323, %v324
        %v326 = vrot.slane %v325, 4
        %v327 = vadd.f32 %v325, %v326
        %v328 = vrot.slane %v327, 2
        %v329 = vadd.f32 %v327, %v328
        %v330 = vrot.slane %v329, 1
        %v331 = vadd.f32 %v329, %v330
        %v332 = vadd.f32 %v331, %v301
        %v333 = vmax.f32 %v332, 0.0
        %v334 = vld [vmem:[%s3] sm:$0xff]
        %v335 = vld [vmem:[%s3 + $0x8] sm:$0xff]
        %v336 = vld [vmem:[%s3 + $0x10] sm:$0xff]
        %v337 = vld [vmem:[%s3 + $0x18] sm:$0xff]
        %v338 = vld [vmem:[%s3 + $0x20] sm:$0xff]
        %v339 = vld [vmem:[%s3 + $0x28] sm:$0xff]
        %v340 = vld [vmem:[%s3 + $0x30] sm:$0xff]
        %v341 = vld [vmem:[%s3 + $0x38] sm:$0xff]
        %v342 = vld [vmem:[%s4] sm:$0xff]
        %v343 = vld [vmem:[%s4 + $0x8] sm:$0xff]
        %v344 = vld [vmem:[%s4 + $0x10] sm:$0xff]
        %v345 = vld [vmem:[%s4 + $0x18] sm:$0xff]
        %v346 = vld [vmem:[%s4 + $0x20] sm:$0xff]
        %v347 = vld [vmem:[%s4 + $0x28] sm:$0xff]
        %v348 = vld [vmem:[%s4 + $0x30] sm:$0xff]
        %v349 = vld [vmem:[%s4 + $0x38] sm:$0xff]
        %v350 = vperm.slane %v333, 0
        %v351 = vmul.f32 %v334, %v350
        %v352 = vmul.f32 %v335, %v350
        %v353 = vmul.f32 %v336, %v350
        %v354 = vmul.f32 %v337, %v350
        %v355 = vmul.f32 %v338, %v350
        %v356 = vmul.f32 %v339, %v350
        %v357 = vmul.f32 %v340, %v350
        %v358 = vmul.f32 %v341, %v350
        %v359 = vsel %vm310, %v351, 0.0
        %360 = vadd.xlane.f32.xlu0 %v359
        %v361 = vpop.xlane.xlu0 %360
        %v362 = vsel %vm310, %v352, 0.0
        %363 = vadd.xlane.f32.xlu0 %v362
        %v364 = vpop.xlane.xlu0 %363
        %v365 = vsel %vm310, %v353, 0.0
        %366 = vadd.xlane.f32.xlu0 %v365
        %v367 = vpop.xlane.xlu0 %366
        %v368 = vsel %vm310, %v354, 0.0
        %369 = vadd.xlane.f32.xlu0 %v368
        %v370 = vpop.xlane.xlu0 %369
        %v371 = vsel %vm310, %v355, 0.0
        %372 = vadd.xlane.f32.xlu0 %v371
        %v373 = vpop.xlane.xlu0 %372
        %v374 = vsel %vm310, %v356, 0.0
        %375 = vadd.xlane.f32.xlu0 %v374
        %v376 = vpop.xlane.xlu0 %375
        %v377 = vsel %vm310, %v357, 0.0
        %378 = vadd.xlane.f32.xlu0 %v377
        %v379 = vpop.xlane.xlu0 %378
        %v380 = vsel %vm310, %v358, 0.0
        %381 = vadd.xlane.f32.xlu0 %v380
        %v382 = vpop.xlane.xlu0 %381
        %v383 = vadd.f32 %v361, %v342
        %v384 = vadd.f32 %v364, %v343
        %v385 = vadd.f32 %v367, %v344
        %v386 = vadd.f32 %v370, %v345
        %v387 = vadd.f32 %v373, %v346
        %v388 = vadd.f32 %v376, %v347
        %v389 = vadd.f32 %v379, %v348
        %v390 = vadd.f32 %v382, %v349
        %v391 = vsub.f32 0.0, %v383
        %v392 = vsub.f32 0.0, %v384
        %v393 = vsub.f32 0.0, %v385
        %v394 = vsub.f32 0.0, %v386
        %v395 = vsub.f32 0.0, %v387
        %v396 = vsub.f32 0.0, %v388
        %v397 = vsub.f32 0.0, %v389
        %v398 = vsub.f32 0.0, %v390
        %v399 = vmul.f32 %v391, 1.442695
        %v400 = vpow.pop %v399
        %v401 = vmul.f32 %v392, 1.442695
        %v402 = vpow.pop %v401
        %v403 = vmul.f32 %v393, 1.442695
        %v404 = vpow.pop %v403
        %v405 = vmul.f32 %v394, 1.442695
        %v406 = vpow.pop %v405
        %v407 = vmul.f32 %v395, 1.442695
        %v408 = vpow.pop %v407
        %v409 = vmul.f32 %v396, 1.442695
        %v410 = vpow.pop %v409
        %v411 = vmul.f32 %v397, 1.442695
        %v412 = vpow.pop %v411
        %v413 = vmul.f32 %v398, 1.442695
        %v414 = vpow.pop %v413
        %v415 = vadd.f32 %v400, 1.0
        %v416 = vadd.f32 %v402, 1.0
        %v417 = vadd.f32 %v404, 1.0
        %v418 = vadd.f32 %v406, 1.0
        %v419 = vadd.f32 %v408, 1.0
        %v420 = vadd.f32 %v410, 1.0
        %v421 = vadd.f32 %v412, 1.0
        %v422 = vadd.f32 %v414, 1.0
        %v423 = vrcp.pop %v415
        %v424 = vmul.f32 %v415, %v423
        %v425 = vsub.f32 1.0, %v424
        %v426 = vmul.f32 %v423, %v425
        %v427 = vadd.f32 %v423, %v426
        %vm428 = vweird.f32 %v415
        %vm429 = vweird.f32 %v423
        %vm430 = vmor %vm428, %vm429
        %v431 = vsel %vm430, %v423, %v427
        %v432 = vand.u32 2147483647, %v415
        %vm433 = vcmp.eq.f32.partialorder %v432, 8.507059e+37
        %v434 = vand.u32 %v415, 2147483648
        %v435 = vor.u32 1.1754944e-38, %v434
        %v436 = vsel %vm433, %v435, %v431
        %v437 = vmul.f32 1.0, %v436
        %v438 = vrcp.pop %v416
        %v439 = vmul.f32 %v416, %v438
        %v440 = vsub.f32 1.0, %v439
        %v441 = vmul.f32 %v438, %v440
        %v442 = vadd.f32 %v438, %v441
        %vm443 = vweird.f32 %v416
        %vm444 = vweird.f32 %v438
        %vm445 = vmor %vm443, %vm444
        %v446 = vsel %vm445, %v438, %v442
        %v447 = vand.u32 2147483647, %v416
        %vm448 = vcmp.eq.f32.partialorder %v447, 8.507059e+37
        %v449 = vand.u32 %v416, 2147483648
        %v450 = vor.u32 1.1754944e-38, %v449
        %v451 = vsel %vm448, %v450, %v446
        %v452 = vmul.f32 1.0, %v451
        %v453 = vrcp.pop %v417
        %v454 = vmul.f32 %v417, %v453
        %v455 = vsub.f32 1.0, %v454
        %v456 = vmul.f32 %v453, %v455
        %v457 = vadd.f32 %v453, %v456
        %vm458 = vweird.f32 %v417
        %vm459 = vweird.f32 %v453
        %vm460 = vmor %vm458, %vm459
        %v461 = vsel %vm460, %v453, %v457
        %v462 = vand.u32 2147483647, %v417
        %vm463 = vcmp.eq.f32.partialorder %v462, 8.507059e+37
        %v464 = vand.u32 %v417, 2147483648
        %v465 = vor.u32 1.1754944e-38, %v464
        %v466 = vsel %vm463, %v465, %v461
        %v467 = vmul.f32 1.0, %v466
        %v468 = vrcp.pop %v418
        %v469 = vmul.f32 %v418, %v468
        %v470 = vsub.f32 1.0, %v469
        %v471 = vmul.f32 %v468, %v470
        %v472 = vadd.f32 %v468, %v471
        %vm473 = vweird.f32 %v418
        %vm474 = vweird.f32 %v468
        %vm475 = vmor %vm473, %vm474
        %v476 = vsel %vm475, %v468, %v472
        %v477 = vand.u32 2147483647, %v418
        %vm478 = vcmp.eq.f32.partialorder %v477, 8.507059e+37
        %v479 = vand.u32 %v418, 2147483648
        %v480 = vor.u32 1.1754944e-38, %v479
        %v481 = vsel %vm478, %v480, %v476
        %v482 = vmul.f32 1.0, %v481
        %v483 = vrcp.pop %v419
        %v484 = vmul.f32 %v419, %v483
        %v485 = vsub.f32 1.0, %v484
        %v486 = vmul.f32 %v483, %v485
        %v487 = vadd.f32 %v483, %v486
        %vm488 = vweird.f32 %v419
        %vm489 = vweird.f32 %v483
        %vm490 = vmor %vm488, %vm489
        %v491 = vsel %vm490, %v483, %v487
        %v492 = vand.u32 2147483647, %v419
        %vm493 = vcmp.eq.f32.partialorder %v492, 8.507059e+37
        %v494 = vand.u32 %v419, 2147483648
        %v495 = vor.u32 1.1754944e-38, %v494
        %v496 = vsel %vm493, %v495, %v491
        %v497 = vmul.f32 1.0, %v496
        %v498 = vrcp.pop %v420
        %v499 = vmul.f32 %v420, %v498
        %v500 = vsub.f32 1.0, %v499
        %v501 = vmul.f32 %v498, %v500
        %v502 = vadd.f32 %v498, %v501
        %vm503 = vweird.f32 %v420
        %vm504 = vweird.f32 %v498
        %vm505 = vmor %vm503, %vm504
        %v506 = vsel %vm505, %v498, %v502
        %v507 = vand.u32 2147483647, %v420
        %vm508 = vcmp.eq.f32.partialorder %v507, 8.507059e+37
        %v509 = vand.u32 %v420, 2147483648
        %v510 = vor.u32 1.1754944e-38, %v509
        %v511 = vsel %vm508, %v510, %v506
        %v512 = vmul.f32 1.0, %v511
        %v513 = vrcp.pop %v421
        %v514 = vmul.f32 %v421, %v513
        %v515 = vsub.f32 1.0, %v514
        %v516 = vmul.f32 %v513, %v515
        %v517 = vadd.f32 %v513, %v516
        %vm518 = vweird.f32 %v421
        %vm519 = vweird.f32 %v513
        %vm520 = vmor %vm518, %vm519
        %v521 = vsel %vm520, %v513, %v517
        %v522 = vand.u32 2147483647, %v421
        %vm523 = vcmp.eq.f32.partialorder %v522, 8.507059e+37
        %v524 = vand.u32 %v421, 2147483648
        %v525 = vor.u32 1.1754944e-38, %v524
        %v526 = vsel %vm523, %v525, %v521
        %v527 = vmul.f32 1.0, %v526
        %v528 = vrcp.pop %v422
        %v529 = vmul.f32 %v422, %v528
        %v530 = vsub.f32 1.0, %v529
        %v531 = vmul.f32 %v528, %v530
        %v532 = vadd.f32 %v528, %v531
        %vm533 = vweird.f32 %v422
        %vm534 = vweird.f32 %v528
        %vm535 = vmor %vm533, %vm534
        %v536 = vsel %vm535, %v528, %v532
        %v537 = vand.u32 2147483647, %v422
        %vm538 = vcmp.eq.f32.partialorder %v537, 8.507059e+37
        %v539 = vand.u32 %v422, 2147483648
        %v540 = vor.u32 1.1754944e-38, %v539
        %v541 = vsel %vm538, %v540, %v536
        %v542 = vmul.f32 1.0, %v541
        %544 = vset.pattern.permute.xlu0 0
        %545 = vperm.xlu0 %544, %v437
        %v546 = vpop.permute.xlu0 %545
        %549 = vset.pattern.permute.xlu0 0
        %550 = vperm.xlu0 %549, %v452
        %v551 = vpop.permute.xlu0 %550
        %554 = vset.pattern.permute.xlu0 0
        %555 = vperm.xlu0 %554, %v467
        %v556 = vpop.permute.xlu0 %555
        %559 = vset.pattern.permute.xlu0 0
        %560 = vperm.xlu0 %559, %v482
        %v561 = vpop.permute.xlu0 %560
        %564 = vset.pattern.permute.xlu0 0
        %565 = vperm.xlu0 %564, %v497
        %v566 = vpop.permute.xlu0 %565
        %569 = vset.pattern.permute.xlu0 0
        %570 = vperm.xlu0 %569, %v512
        %v571 = vpop.permute.xlu0 %570
        %574 = vset.pattern.permute.xlu0 0
        %575 = vperm.xlu0 %574, %v527
        %v576 = vpop.permute.xlu0 %575
        %579 = vset.pattern.permute.xlu0 0
        %580 = vperm.xlu0 %579, %v542
        %v581 = vpop.permute.xlu0 %580
        %v583 = vmul.f32 %v245, %v546
        %v584 = vmul.f32 %v246, %v546
        %v585 = vmul.f32 %v247, %v551
        %v586 = vmul.f32 %v248, %v551
        %v587 = vmul.f32 %v249, %v556
        %v588 = vmul.f32 %v250, %v556
        %v589 = vmul.f32 %v251, %v561
        %v590 = vmul.f32 %v252, %v561
        %v591 = vmul.f32 %v253, %v566
        %v592 = vmul.f32 %v254, %v566
        %v593 = vmul.f32 %v255, %v571
        %v594 = vmul.f32 %v256, %v571
        %v595 = vmul.f32 %v257, %v576
        %v596 = vmul.f32 %v258, %v576
        %v597 = vmul.f32 %v259, %v581
        %v598 = vmul.f32 %v260, %v581
        %599 = vst [vmem:[%s244] sm:$0xff] %v583
        %600 = vst [vmem:[%s244 + $0x8] sm:$0xff] %v584
        %601 = vst [vmem:[%s244 + $0x10] sm:$0xff] %v585
        %602 = vst [vmem:[%s244 + $0x18] sm:$0xff] %v586
        %603 = vst [vmem:[%s244 + $0x20] sm:$0xff] %v587
        %604 = vst [vmem:[%s244 + $0x28] sm:$0xff] %v588
        %605 = vst [vmem:[%s244 + $0x30] sm:$0xff] %v589
        %606 = vst [vmem:[%s244 + $0x38] sm:$0xff] %v590
        %607 = vst [vmem:[%s244 + $0x40] sm:$0xff] %v591
        %608 = vst [vmem:[%s244 + $0x48] sm:$0xff] %v592
        %609 = vst [vmem:[%s244 + $0x50] sm:$0xff] %v593
        %610 = vst [vmem:[%s244 + $0x58] sm:$0xff] %v594
        %611 = vst [vmem:[%s244 + $0x60] sm:$0xff] %v595
        %612 = vst [vmem:[%s244 + $0x68] sm:$0xff] %v596
        %613 = vst [vmem:[%s244 + $0x70] sm:$0xff] %v597
        %614 = vst [vmem:[%s244 + $0x78] sm:$0xff] %v598
        %s615 = sand.u32 %s140, 1
        %s616 = scalar_lea.sflag [#allocation4], %s615
        %s617 = sand.u32 %s140, 1
        %s618 = smul.addr %s617, 128
        %s619 = scalar_lea.vmem [#allocation5], %s618
        // Predicated region
        $region45: #{tpu_custom_call.1} parent=39 // pred_check
          %p620 = pneg %p150
        $region46: #{tpu_custom_call.1} parent=39 // pred_check_branch
          %622 = sbr.rel (%p620) target = $region48
        $region47: #{tpu_custom_call.1} parent=39 // pred_region
          %624 = vsyncadd %s616, 0
          %s625 = smul.addr %s22, 16
          %s626 = smul.addr %s625, 8
          %s627 = scalar_lea.hbm %s5, %s626
          %s628 = sshll.u32 %s619, 4
          %s629 = int_to_ptr.vmem [resolvable:$true] %s628
          %s630 = sshll.u32 %s627, 4
          %s631 = int_to_ptr.hbm [resolvable:$true] %s630
          %636 = dma.vmem_to_hbm [thread:$0]  %s629, 2048, %s631, %s616, 256, 256, 16
        $region48: #{tpu_custom_call.1} parent=39 // pred_fallthru
          _
      $region40: #{tpu_custom_call.1} parent=5 // pred_fallthru
        _
      %p637 = scmp.le.s32.totalorder 2, %s17
      // Predicated region
      $region49: #{tpu_custom_call.1} parent=5 // pred_check
        %p638 = pneg %p637
      $region50: #{tpu_custom_call.1} parent=5 // pred_check_branch
        %640 = sbr.rel (%p638) target = $region52
      $region51: #{tpu_custom_call.1} parent=5 // pred_region
        %s641 = ssub.s32 %s17, 2
        // Predicated region
        $region53: #{tpu_custom_call.1} parent=51 // pred_check
          %p642 = pneg %p156
        $region54: #{tpu_custom_call.1} parent=51 // pred_check_branch
          %644 = sbr.rel (%p642) target = $region56
        $region55: #{tpu_custom_call.1} parent=51 // pred_region
          %s645 = sand.u32 %s141, 1
          %s646 = scalar_lea.sflag [#allocation4], %s645
          %s647 = sand.u32 %s141, 1
          %s648 = smul.addr %s647, 128
          %s649 = scalar_lea.vmem [#allocation5], %s648
          %651 = dma.done %s646, 2048
        $region56: #{tpu_custom_call.1} parent=51 // pred_fallthru
          _
      $region52: #{tpu_custom_call.1} parent=5 // pred_fallthru
        _
    $region6: #{tpu_custom_call.1} parent=1 // loop_footer
      %s21 = sadd.s32 1, %s17
    $region7: #{tpu_custom_call.1} parent=1 // loop_footer_branch
      %16 = sbr.rel target = $region3
    $region8: #{tpu_custom_call.1} parent=1 // loop_exit
      _
    %652 = vsyncpa [#allocation3], 1
    %s653 = scalar_lea.sflag [#allocation3], 1
    %654 = vsyncpa %s653, 1
    %655 = vsyncpa [#allocation4], 1
    %s656 = scalar_lea.sflag [#allocation4], 1
    %657 = vsyncpa %s656, 1

</llo_original>
